<compile_context>
chip_gen: v7x
topology: tpu7x:2x2x1
jax: 0.10.0
libtpu: 0.0.40
codegen_flags: <defaults>
</compile_context>

<pallas_src>
import jax
import jax.numpy as jnp
from jax import lax
from jax.experimental import pallas as pl
from jax.experimental.pallas import tpu as pltpu


def _whiten_kernel(x_ref, w_ref, o_ref):
    # x_ref: (Bb, N, F)   w_ref: (Bb, K, N) = diag(s^-1/2) @ u^T (pre-folded)
    # o_ref: (Bb, K, F)
    x = x_ref[...]                                          # (Bb, N, F)
    # x = x - x.mean(dim=-2): per-feature mean over nodes (SVD was taken on the
    # *uncentered* x, matching the PyTorch code exactly).
    xc = x - jnp.mean(x, axis=1, keepdims=True)             # (Bb, N, F)
    # Batched MXU contraction over the node dimension: (K, N) @ (N, F) per b.
    out = jnp.einsum(
        "bkn,bnf->bkf", w_ref[...], xc,
        preferred_element_type=jnp.float32,
    )                                                       # (Bb, K, F)
    o_ref[...] = out.astype(o_ref.dtype)


def ica_whiten(x, batch_size: int, fin: int, *, batch_block: int | None = None):
    """Pallas implementation of ICADenoiser.whiten.

    Note: like the PyTorch .view, this assumes every graph contributes exactly
    total_nodes // batch_size nodes.
    """
    total_nodes, f = x.shape
    assert f == fin
    n = total_nodes // batch_size
    xb = x.reshape(batch_size, n, fin)

    # SVD outside the kernel (no Mosaic SVD). Fold diag(s^-1/2) into u and
    # pre-transpose to (B, K, N) here so the kernel sees a pure matmul; this
    # scale/transpose fuses with the SVD epilogue in XLA.
    u, s, _ = jnp.linalg.svd(xb, full_matrices=False)       # u:(B,N,K), s:(B,K)
    k = s.shape[-1]
    w = jnp.swapaxes(u * lax.rsqrt(s)[:, None, :], -1, -2)  # (B, K, N)
    w = w.astype(x.dtype)

    # One grid step for the whole batch by default; optionally block over the
    # batch for very large B (block must divide B, last two block dims stay
    # equal to the full array dims so the (8,128) constraint never triggers).
    bb = batch_size if batch_block is None else max(1, min(batch_block, batch_size))
    while batch_size % bb != 0:
        bb -= 1
    grid = (batch_size // bb,)

    out = pl.pallas_call(
        _whiten_kernel,
        out_shape=jax.ShapeDtypeStruct((batch_size, k, fin), x.dtype),
        grid_spec=pltpu.PrefetchScalarGridSpec(
            num_scalar_prefetch=0,
            grid=grid,
            in_specs=[
                pl.BlockSpec((bb, n, fin), lambda b: (b, 0, 0)),
                pl.BlockSpec((bb, k, n), lambda b: (b, 0, 0)),
            ],
            out_specs=pl.BlockSpec((bb, k, fin), lambda b: (b, 0, 0)),
        ),
        compiler_params=pltpu.CompilerParams(
            # Batch blocks are fully independent -> shard across TCs on v7x.
            dimension_semantics=("parallel",)),
    )(xb, w)
    return out


class ICADenoiser:
    """JAX mirror of the PyTorch ICADenoiser."""

    def __init__(self, fin: int, key=None):
        self.fin = fin
        # nn.Linear(fin, fin) params — carried for parity; the PyTorch forward
        # never applies self.lin, so they are unused.
        key = jax.random.PRNGKey(42) if key is None else key
        kw, kb = jax.random.split(key)
        bound = 1.0 / (fin ** 0.5)
        self.lin_w = jax.random.uniform(kw, (fin, fin), jnp.float32, -bound, bound)
        self.lin_b = jax.random.uniform(kb, (fin,), jnp.float32, -bound, bound)

    def whiten(self, x, batch_size: int):
        return ica_whiten(x, batch_size, self.fin)

    def forward(self, data, batch_size: int):
        target, batch, x = data["y"], data["batch"], data["x"]
        x = self.whiten(x, batch_size)
        # PyTorch forward ends with `pass` (returns None); we return the
        # whitened tensor so the kernel result is observable.
        return x


if __name__ == "__main__":
    FIN = 8           # feature dim (fin)
    N_PER_GRAPH = 16  # nodes per graph
    BATCH = 2         # batch_size

    key = jax.random.PRNGKey(0)
    kx, ky = jax.random.split(key)
    x = jax.random.normal(kx, (BATCH * N_PER_GRAPH, FIN), jnp.float32)
    data = {
        "x": x,
        "y": jax.random.normal(ky, (BATCH,), jnp.float32),
        "batch": jnp.repeat(jnp.arange(BATCH, dtype=jnp.int32), N_PER_GRAPH),
    }

    model = ICADenoiser(FIN)
    out = model.forward(data, BATCH)
    out = jax.block_until_ready(out)

    # Sanity: shape (B, K, fin) with K = min(N, fin); values finite.
    assert out.shape == (BATCH, min(N_PER_GRAPH, FIN), FIN), out.shape
    assert bool(jnp.all(jnp.isfinite(out)))

    # Cross-check against a plain-JAX reference of the same math.
    xb = x.reshape(BATCH, N_PER_GRAPH, FIN)
    u, s, _ = jnp.linalg.svd(xb, full_matrices=False)
    xc = xb - xb.mean(axis=1, keepdims=True)
    ref = jnp.einsum("bkn,bnf->bkf", jnp.swapaxes(u / jnp.sqrt(s)[:, None, :], -1, -2), xc)
    assert bool(jnp.allclose(out, ref, atol=1e-4, rtol=1e-4))

    print("KERNEL_OK")
</pallas_src>

<mosaic_0001>
module attributes {stable_mosaic.version = 11 : i64} {
  func.func @_whiten_kernel(%arg0: i32, %arg1: memref<2x16x8xf32, #tpu.memory_space<vmem>>, %arg2: memref<2x8x16xf32, #tpu.memory_space<vmem>>, %arg3: memref<2x8x8xf32, #tpu.memory_space<vmem>>) attributes {dimension_semantics = [#tpu.dimension_semantics<parallel>], iteration_bounds = array<i64: 1>, scalar_prefetch = 0 : i64, scratch_operands = 0 : i64, tpu.core_type = #tpu.core_type<tc>, window_params = [{transform_indices = @transform_0, window_bounds = array<i64: 2, 16, 8>}, {transform_indices = @transform_1, window_bounds = array<i64: 2, 8, 16>}, {transform_indices = @transform_2, window_bounds = array<i64: 2, 8, 8>}]} {
    %c0 = arith.constant 0 : index
    %c0_0 = arith.constant 0 : index
    %c0_1 = arith.constant 0 : index
    %0 = vector.load %arg1[%c0, %c0_0, %c0_1] : memref<2x16x8xf32, #tpu.memory_space<vmem>>, vector<2x16x8xf32>
    %cst = arith.constant dense<0.000000e+00> : vector<2x8xf32>
    %1 = vector.multi_reduction <add>, %0, %cst [1] : vector<2x16x8xf32> to vector<2x8xf32>
    %2 = vector.shape_cast %1 : vector<2x8xf32> to vector<2x1x8xf32>
    %cst_2 = arith.constant 1.600000e+01 : f32
    %3 = vector.broadcast %cst_2 : f32 to vector<2x1x8xf32>
    %4 = arith.divf %2, %3 : vector<2x1x8xf32>
    %5 = vector.broadcast %4 : vector<2x1x8xf32> to vector<2x16x8xf32>
    %6 = arith.subf %0, %5 : vector<2x16x8xf32>
    %c0_3 = arith.constant 0 : index
    %c0_4 = arith.constant 0 : index
    %c0_5 = arith.constant 0 : index
    %7 = vector.load %arg2[%c0_3, %c0_4, %c0_5] : memref<2x8x16xf32, #tpu.memory_space<vmem>>, vector<2x8x16xf32>
    "tpu.trace_start"() <{level = 10 : i32, message = "bkn,bnf->bkf"}> : () -> ()
    %cst_6 = arith.constant dense<0.000000e+00> : vector<2x8x8xf32>
    %8 = tpu.matmul %7, %6, %cst_6 {dimension_numbers = #tpu.dot_dimension_numbers<[2], [1], [1], [2], [0, 0, 0, 1, 1, 2], [0], [0]>} : vector<2x8x16xf32>, vector<2x16x8xf32>, vector<2x8x8xf32> -> vector<2x8x8xf32>
    "tpu.trace_stop"() : () -> ()
    %c0_7 = arith.constant 0 : index
    %c0_8 = arith.constant 0 : index
    %c0_9 = arith.constant 0 : index
    %9 = vector.load %arg3[%c0_7, %c0_8, %c0_9] : memref<2x8x8xf32, #tpu.memory_space<vmem>>, vector<2x8x8xf32>
    tpu.vector_store %arg3[%c0_7, %c0_8, %c0_9], %8 {strides = array<i32>} : memref<2x8x8xf32, #tpu.memory_space<vmem>>, vector<2x8x8xf32>,
    return
  }
  func.func @transform_0(%arg0: i32) -> (i32, i32, i32) {
    %c0_i32 = arith.constant 0 : i32
    %c0_i32_0 = arith.constant 0 : i32
    %c0_i32_1 = arith.constant 0 : i32
    return %arg0, %c0_i32, %c0_i32_0 : i32, i32, i32
  }
  func.func @transform_1(%arg0: i32) -> (i32, i32, i32) {
    %c0_i32 = arith.constant 0 : i32
    %c0_i32_0 = arith.constant 0 : i32
    %c0_i32_1 = arith.constant 0 : i32
    return %arg0, %c0_i32, %c0_i32_0 : i32, i32, i32
  }
  func.func @transform_2(%arg0: i32) -> (i32, i32, i32) {
    %c0_i32 = arith.constant 0 : i32
    %c0_i32_0 = arith.constant 0 : i32
    %c0_i32_1 = arith.constant 0 : i32
    return %arg0, %c0_i32, %c0_i32_0 : i32, i32, i32
  }
}

</mosaic_0001>

<llo_original>
// kernel: tpu_custom_call.1
$region0: #{tpu_custom_call.1}
  #allocation0 [shape = 'u32[]', space=smem, size = 0x4, offset = 0x4, fixed_abs, tag = 'smem constant byte address 0x4 - core index']
  #allocation1 [shape = 'u32[144,128]{1,0:T(1,128)}', space=vmem, size = 0x12000, scoped, tag = 'internal scratch']
  %s0 = inlined_call_operand.vmem [shape: f32[2,16,8], index: 0, kind: input, shape index: {}]
  %s1 = inlined_call_operand.vmem [shape: f32[2,8,16], index: 1, kind: input, shape index: {}]
  %s2 = inlined_call_operand.hbm [shape: f32[2,8,8], index: 2, kind: output, shape index: {}]
  %s3 = sld [smem:[#allocation0]]
  $region18: #{tpu_custom_call.1} parent=0
    _
  %s5 = ssub.s32 1, %s3
  %s6 = scalar_select 0, %s5, %s3
  $region1: #{tpu_custom_call.1} parent=0
    #allocation2 [shape = 'u8[8192]{0}', space=vmem, size = 0x2000, scoped, tag = 'output window, operand 0, single buffered']
    #allocation3 [shape = 's32[1]{0}', space=sflag, size = 0x4, scoped, tag = 'scoped memory for tpu_custom_call.1']
    %7 = vsyncpa [#allocation3], 0
    // Predicated region
    $region2: #{tpu_custom_call.1} parent=1 // pred_check
      _
    $region3: #{tpu_custom_call.1} parent=1 // pred_check_branch
      %9 = sbr.rel (0) target = $region5
    $region4: #{tpu_custom_call.1} parent=1 // pred_region
      _
    $region5: #{tpu_custom_call.1} parent=1 // pred_fallthru
      _
    // Predicated region
    $region6: #{tpu_custom_call.1} parent=1 // pred_check
      _
    $region7: #{tpu_custom_call.1} parent=1 // pred_check_branch
      %11 = sbr.rel (0) target = $region9
    $region8: #{tpu_custom_call.1} parent=1 // pred_region
      _
    $region9: #{tpu_custom_call.1} parent=1 // pred_fallthru
      _
    %v12 = vld [vmem:[%s0] sm:$0xff]
    %v13 = vld [vmem:[%s0 + $0x8] sm:$0xff]
    %v14 = vld [vmem:[%s0 + $0x10] sm:$0xff]
    %v15 = vld [vmem:[%s0 + $0x18] sm:$0xff]
    %vm16 = vcmask 64512
    %v17 = vsel %vm16, %v12, 0.0
    %v18 = vsel %vm16, %v13, 0.0
    %v19 = vadd.f32 %v17, %v18
    %v20 = vrot.slane %v19, 4
    %v21 = vadd.f32 %v19, %v20
    %v22 = vrot.slane %v21, 2
    %v23 = vadd.f32 %v21, %v22
    %v24 = vrot.slane %v23, 1
    %v25 = vadd.f32 %v23, %v24
    %v26 = vsel %vm16, %v14, 0.0
    %v27 = vsel %vm16, %v15, 0.0
    %v28 = vadd.f32 %v26, %v27
    %v29 = vrot.slane %v28, 4
    %v30 = vadd.f32 %v28, %v29
    %v31 = vrot.slane %v30, 2
    %v32 = vadd.f32 %v30, %v31
    %v33 = vrot.slane %v32, 1
    %v34 = vadd.f32 %v32, %v33
    %v35 = vrcp.pop 16.0
    %v36 = vmul.f32 %v25, %v35
    %v37 = vmul.f32 %v34, %v35
    %v38 = vsub.f32 %v12, %v36
    %v39 = vsub.f32 %v13, %v36
    %v40 = vsub.f32 %v14, %v37
    %v41 = vsub.f32 %v15, %v37
    %v42 = vld [vmem:[%s1] sm:$0xff]
    %v43 = vld [vmem:[%s1 + $0x8] sm:$0xff]
    %vm44 = vcmask 130048
    %v46 = vsel %vm44, %v42, 0
    %48 = vmatprep.subr.mxu0 0.0
    %49 = vmatpush1.msra.mxu0 %v38
    %50 = vmatprep.subr.mxu0 0.0
    %51 = vmatpush1.msra.mxu0 %v39
    %52 = vmatprep.subr.mxu0 0.0
    %53 = vmatpush1.msra.mxu0 0.0
    %54 = vmatprep.subr.mxu0 0.0
    %55 = vmatpush1.msra.mxu0 0.0
    %56 = vmatprep.subr.mxu0 0.0
    %57 = vmatpush1.msra.mxu0 0.0
    %58 = vmatprep.subr.mxu0 0.0
    %59 = vmatpush1.msra.mxu0 0.0
    %60 = vmatprep.subr.mxu0 0.0
    %61 = vmatpush1.msra.mxu0 0.0
    %62 = vmatprep.subr.mxu0 0.0
    %63 = vmatpush1.msra.mxu0 0.0
    %64 = vmatprep.subr.mxu0 0.0
    %65 = vmatpush1.msra.mxu0 0.0
    %66 = vmatprep.subr.mxu0 0.0
    %67 = vmatpush1.msra.mxu0 0.0
    %68 = vmatprep.subr.mxu0 0.0
    %69 = vmatpush1.msra.mxu0 0.0
    %70 = vmatprep.subr.mxu0 0.0
    %71 = vmatpush1.msra.mxu0 0.0
    %72 = vmatprep.subr.mxu0 0.0
    %73 = vmatpush1.msra.mxu0 0.0
    %74 = vmatprep.subr.mxu0 0.0
    %75 = vmatpush1.msra.mxu0 0.0
    %76 = vmatprep.subr.mxu0 0.0
    %77 = vmatpush1.msra.mxu0 0.0
    %78 = vmatprep.subr.mxu0 0.0
    %79 = vmatpush1.msra.mxu0 0.0
    %80 = vmatprep.subr.mxu0 0.0
    %81 = vmatpush1.msra.mxu0 0.0
    %82 = vmatprep.subr.mxu0 0.0
    %83 = vmatpush1.msra.mxu0 0.0
    %84 = vmatprep.subr.mxu0 0.0
    %85 = vmatpush1.msra.mxu0 0.0
    %86 = vmatprep.subr.mxu0 0.0
    %87 = vmatpush1.msra.mxu0 0.0
    %88 = vmatprep.subr.mxu0 0.0
    %89 = vmatpush1.msra.mxu0 0.0
    %90 = vmatprep.subr.mxu0 0.0
    %91 = vmatpush1.msra.mxu0 0.0
    %92 = vmatprep.subr.mxu0 0.0
    %93 = vmatpush1.msra.mxu0 0.0
    %94 = vmatprep.subr.mxu0 0.0
    %95 = vmatpush1.msra.mxu0 0.0
    %96 = vmatprep.subr.mxu0 0.0
    %97 = vmatpush1.msra.mxu0 0.0
    %98 = vmatprep.subr.mxu0 0.0
    %99 = vmatpush1.msra.mxu0 0.0
    %100 = vmatprep.subr.mxu0 0.0
    %101 = vmatpush1.msra.mxu0 0.0
    %102 = vmatprep.subr.mxu0 0.0
    %103 = vmatpush1.msra.mxu0 0.0
    %104 = vmatprep.subr.mxu0 0.0
    %105 = vmatpush1.msra.mxu0 0.0
    %106 = vmatprep.subr.mxu0 0.0
    %107 = vmatpush1.msra.mxu0 0.0
    %108 = vmatprep.subr.mxu0 0.0
    %109 = vmatpush1.msra.mxu0 0.0
    %110 = vmatprep.subr.mxu0 0.0
    %111 = vmatpush1.msra.mxu0 0.0
    %112 = vmatprep.mubr.f32.mxu0 0.0
    %113 = vmatmul.mubr.f32.gmra.mrb[0].mxu0 %v46
    %v114 = vpop.f32.mrb[0].mxu0
    %v115 = vadd.f32 0.0, %v114
    %v116 = vpop.f32.mrb[0].mxu0
    %117 = vdwg.mxu0
    %v119 = vsel %vm44, %v43, 0
    %121 = vmatprep.subr.mxu0 0.0
    %122 = vmatpush1.msra.mxu0 %v40
    %123 = vmatprep.subr.mxu0 0.0
    %124 = vmatpush1.msra.mxu0 %v41
    %125 = vmatprep.subr.mxu0 0.0
    %126 = vmatpush1.msra.mxu0 0.0
    %127 = vmatprep.subr.mxu0 0.0
    %128 = vmatpush1.msra.mxu0 0.0
    %129 = vmatprep.subr.mxu0 0.0
    %130 = vmatpush1.msra.mxu0 0.0
    %131 = vmatprep.subr.mxu0 0.0
    %132 = vmatpush1.msra.mxu0 0.0
    %133 = vmatprep.subr.mxu0 0.0
    %134 = vmatpush1.msra.mxu0 0.0
    %135 = vmatprep.subr.mxu0 0.0
    %136 = vmatpush1.msra.mxu0 0.0
    %137 = vmatprep.subr.mxu0 0.0
    %138 = vmatpush1.msra.mxu0 0.0
    %139 = vmatprep.subr.mxu0 0.0
    %140 = vmatpush1.msra.mxu0 0.0
    %141 = vmatprep.subr.mxu0 0.0
    %142 = vmatpush1.msra.mxu0 0.0
    %143 = vmatprep.subr.mxu0 0.0
    %144 = vmatpush1.msra.mxu0 0.0
    %145 = vmatprep.subr.mxu0 0.0
    %146 = vmatpush1.msra.mxu0 0.0
    %147 = vmatprep.subr.mxu0 0.0
    %148 = vmatpush1.msra.mxu0 0.0
    %149 = vmatprep.subr.mxu0 0.0
    %150 = vmatpush1.msra.mxu0 0.0
    %151 = vmatprep.subr.mxu0 0.0
    %152 = vmatpush1.msra.mxu0 0.0
    %153 = vmatprep.subr.mxu0 0.0
    %154 = vmatpush1.msra.mxu0 0.0
    %155 = vmatprep.subr.mxu0 0.0
    %156 = vmatpush1.msra.mxu0 0.0
    %157 = vmatprep.subr.mxu0 0.0
    %158 = vmatpush1.msra.mxu0 0.0
    %159 = vmatprep.subr.mxu0 0.0
    %160 = vmatpush1.msra.mxu0 0.0
    %161 = vmatprep.subr.mxu0 0.0
    %162 = vmatpush1.msra.mxu0 0.0
    %163 = vmatprep.subr.mxu0 0.0
    %164 = vmatpush1.msra.mxu0 0.0
    %165 = vmatprep.subr.mxu0 0.0
    %166 = vmatpush1.msra.mxu0 0.0
    %167 = vmatprep.subr.mxu0 0.0
    %168 = vmatpush1.msra.mxu0 0.0
    %169 = vmatprep.subr.mxu0 0.0
    %170 = vmatpush1.msra.mxu0 0.0
    %171 = vmatprep.subr.mxu0 0.0
    %172 = vmatpush1.msra.mxu0 0.0
    %173 = vmatprep.subr.mxu0 0.0
    %174 = vmatpush1.msra.mxu0 0.0
    %175 = vmatprep.subr.mxu0 0.0
    %176 = vmatpush1.msra.mxu0 0.0
    %177 = vmatprep.subr.mxu0 0.0
    %178 = vmatpush1.msra.mxu0 0.0
    %179 = vmatprep.subr.mxu0 0.0
    %180 = vmatpush1.msra.mxu0 0.0
    %181 = vmatprep.subr.mxu0 0.0
    %182 = vmatpush1.msra.mxu0 0.0
    %183 = vmatprep.subr.mxu0 0.0
    %184 = vmatpush1.msra.mxu0 0.0
    %185 = vmatprep.mubr.f32.mxu0 0.0
    %186 = vmatmul.mubr.f32.gmra.mrb[0].mxu0 %v119
    %v187 = vpop.f32.mrb[0].mxu0
    %v188 = vadd.f32 0.0, %v187
    %v189 = vpop.f32.mrb[0].mxu0
    %190 = vdwg.mxu0
    %191 = vst.msk [vmem:[#allocation2] sm:$0xff] %vm16, %v115
    %192 = vst.msk [vmem:[#allocation2 + $0x8] sm:$0xff] %vm16, %v188
    // Predicated region
    $region10: #{tpu_custom_call.1} parent=1 // pred_check
      _
    $region11: #{tpu_custom_call.1} parent=1 // pred_check_branch
      %194 = sbr.rel (0) target = $region13
    $region12: #{tpu_custom_call.1} parent=1 // pred_region
      %s196 = ssub.s32 256, 256
      %197 = vsyncadd [#allocation3], %s196
      %s198 = sshll.u32 [#allocation2], 4
      %s199 = int_to_ptr.vmem [resolvable:$true] %s198
      %204 = dma.vmem_to_hbm [thread:$0]  %s199, 256, %s2, [#allocation3], 128, 128, 8
    $region13: #{tpu_custom_call.1} parent=1 // pred_fallthru
      _
    // Predicated region
    $region14: #{tpu_custom_call.1} parent=1 // pred_check
      _
    $region15: #{tpu_custom_call.1} parent=1 // pred_check_branch
      %206 = sbr.rel (0) target = $region17
    $region16: #{tpu_custom_call.1} parent=1 // pred_region
      %207 = dma.done [#allocation3], 256
    $region17: #{tpu_custom_call.1} parent=1 // pred_fallthru
      _
    %208 = vsyncpa [#allocation3], 1

</llo_original>
